<compile_context>
chip_gen: v6e
topology: v6e:2x2x1
jax: 0.10.0
libtpu: 0.0.40
codegen_flags: <defaults>
</compile_context>

<pallas_src>
import jax
import jax.numpy as jnp
from jax.experimental import pallas as pl
from jax.experimental.pallas import tpu as pltpu


def _outer_product_kernel(g_ref, f_ref, o_ref):
    # g_ref: (TB, Dg)   f_ref: (TB, Df)   o_ref: (TB, Dg, Df)
    g = g_ref[...]
    f = f_ref[...]
    # Batched outer product on the VPU: (TB, Dg, 1) * (TB, 1, Df)
    o_ref[...] = (g[:, :, None] * f[:, None, :]).astype(o_ref.dtype)


def _choose_batch_tile(B: int, Dg: int, Df: int, itemsize: int,
                       max_tile_bytes: int) -> int:
    """Pick TB so the (TB, Dg, Df) output tile is ~max_tile_bytes.

    When TB < B we round down to a multiple of 8 so the (TB, Dg)/(TB, Df)
    input blocks keep an 8-aligned sublane dimension.
    """
    per_sample = Dg * Df * itemsize
    tb = max(1, max_tile_bytes // per_sample)
    if tb >= B:
        return B                      # single (or full-dim) block: always legal
    tb = max(8, (tb // 8) * 8)
    return min(tb, B)


def multi_linear_map(f: jax.Array, g: jax.Array,
                     *, max_tile_bytes: int = 4 << 20) -> jax.Array:
    """Pallas equivalent of MultiLinearMap.forward(f, g).

    f: (B, Df), g: (B, Dg)  ->  (B, Dg * Df)
    """
    B, Df = f.shape
    Bg, Dg = g.shape
    assert B == Bg, "batch dims must match"

    # Promote to a common dtype explicitly (avoid implicit-cast surprises).
    out_dtype = jnp.promote_types(f.dtype, g.dtype)
    f = f.astype(out_dtype)
    g = g.astype(out_dtype)
    itemsize = jnp.dtype(out_dtype).itemsize

    TB = _choose_batch_tile(B, Dg, Df, itemsize, max_tile_bytes)
    grid = (pl.cdiv(B, TB),)

    cost = pl.CostEstimate(
        flops=B * Dg * Df,
        transcendentals=0,
        bytes_accessed=itemsize * (B * Dg * Df + B * Dg + B * Df),
    )

    out = pl.pallas_call(
        _outer_product_kernel,
        out_shape=jax.ShapeDtypeStruct((B, Dg, Df), out_dtype),
        grid_spec=pltpu.PrefetchScalarGridSpec(
            num_scalar_prefetch=0,
            grid=grid,
            in_specs=[
                pl.BlockSpec((TB, Dg), lambda b: (b, 0)),   # g tile
                pl.BlockSpec((TB, Df), lambda b: (b, 0)),   # f tile
            ],
            out_specs=pl.BlockSpec((TB, Dg, Df), lambda b: (b, 0, 0)),
        ),
        compiler_params=pltpu.CompilerParams(
            dimension_semantics=("parallel",),   # shards batch tiles across TCs on v7x
        ),
        cost_estimate=cost,
    )(g, f)

    return out.reshape(B, Dg * Df)


def multi_linear_map_ref(f: jax.Array, g: jax.Array) -> jax.Array:
    """Pure-JAX reference mirroring torch.bmm(g.unsqueeze(2), f.unsqueeze(1)).view(B, -1)."""
    B = f.shape[0]
    out_dtype = jnp.promote_types(f.dtype, g.dtype)
    return jnp.einsum("bi,bj->bij", g.astype(out_dtype),
                      f.astype(out_dtype)).reshape(B, -1)


if __name__ == "__main__":
    key = jax.random.PRNGKey(0)

    # Case 1: small shapes matching the module spec (B=2, Df=128, Dg=32).
    kf, kg = jax.random.split(key)
    B, Df, Dg = 2, 128, 32
    f = jax.random.normal(kf, (B, Df), dtype=jnp.float32)
    g = jax.random.normal(kg, (B, Dg), dtype=jnp.float32)

    out = multi_linear_map(f, g)
    jax.block_until_ready(out)
    ref = multi_linear_map_ref(f, g)
    assert out.shape == (B, Dg * Df), out.shape
    assert jnp.allclose(out, ref, atol=1e-6, rtol=1e-6), "mismatch vs reference (case 1)"

    # Case 2: exercise multi-step batch tiling with a ragged last tile
    # (B=40, TB forced to 16 -> grid of 3 with an 8-row final block).
    kf2, kg2 = jax.random.split(kg)
    B2, Df2, Dg2 = 40, 128, 16
    f2 = jax.random.normal(kf2, (B2, Df2), dtype=jnp.float32)
    g2 = jax.random.normal(kg2, (B2, Dg2), dtype=jnp.float32)

    out2 = multi_linear_map(f2, g2, max_tile_bytes=16 * Dg2 * Df2 * 4)
    jax.block_until_ready(out2)
    ref2 = multi_linear_map_ref(f2, g2)
    assert out2.shape == (B2, Dg2 * Df2), out2.shape
    assert jnp.allclose(out2, ref2, atol=1e-6, rtol=1e-6), "mismatch vs reference (case 2)"

    print("KERNEL_OK")
</pallas_src>

<mosaic_0001>
module attributes {stable_mosaic.version = 11 : i64} {
  func.func @_outer_product_kernel(%arg0: i32, %arg1: memref<2x32xf32, #tpu.memory_space<vmem>>, %arg2: memref<2x128xf32, #tpu.memory_space<vmem>>, %arg3: memref<2x32x128xf32, #tpu.memory_space<vmem>>) attributes {dimension_semantics = [#tpu.dimension_semantics<parallel>], iteration_bounds = array<i64: 1>, scalar_prefetch = 0 : i64, scratch_operands = 0 : i64, tpu.core_type = #tpu.core_type<tc>, window_params = [{transform_indices = @transform_0, window_bounds = array<i64: 2, 32>}, {transform_indices = @transform_1, window_bounds = array<i64: 2, 128>}, {transform_indices = @transform_2, window_bounds = array<i64: 2, 32, 128>}]} {
    %c0 = arith.constant 0 : index
    %c0_0 = arith.constant 0 : index
    %0 = vector.load %arg1[%c0, %c0_0] : memref<2x32xf32, #tpu.memory_space<vmem>>, vector<2x32xf32>
    %c0_1 = arith.constant 0 : index
    %c0_2 = arith.constant 0 : index
    %1 = vector.load %arg2[%c0_1, %c0_2] : memref<2x128xf32, #tpu.memory_space<vmem>>, vector<2x128xf32>
    %2 = vector.shape_cast %0 : vector<2x32xf32> to vector<2x32x1xf32>
    %3 = vector.shape_cast %1 : vector<2x128xf32> to vector<2x1x128xf32>
    %4 = vector.broadcast %2 : vector<2x32x1xf32> to vector<2x32x128xf32>
    %5 = vector.broadcast %3 : vector<2x1x128xf32> to vector<2x32x128xf32>
    %6 = arith.mulf %4, %5 : vector<2x32x128xf32>
    %c0_3 = arith.constant 0 : index
    %c0_4 = arith.constant 0 : index
    %c0_5 = arith.constant 0 : index
    %7 = vector.load %arg3[%c0_3, %c0_4, %c0_5] : memref<2x32x128xf32, #tpu.memory_space<vmem>>, vector<2x32x128xf32>
    tpu.vector_store %arg3[%c0_3, %c0_4, %c0_5], %6 {strides = array<i32>} : memref<2x32x128xf32, #tpu.memory_space<vmem>>, vector<2x32x128xf32>,
    return
  }
  func.func @transform_0(%arg0: i32) -> (i32, i32) {
    %c0_i32 = arith.constant 0 : i32
    %c0_i32_0 = arith.constant 0 : i32
    return %arg0, %c0_i32 : i32, i32
  }
  func.func @transform_1(%arg0: i32) -> (i32, i32) {
    %c0_i32 = arith.constant 0 : i32
    %c0_i32_0 = arith.constant 0 : i32
    return %arg0, %c0_i32 : i32, i32
  }
  func.func @transform_2(%arg0: i32) -> (i32, i32, i32) {
    %c0_i32 = arith.constant 0 : i32
    %c0_i32_0 = arith.constant 0 : i32
    %c0_i32_1 = arith.constant 0 : i32
    return %arg0, %c0_i32, %c0_i32_0 : i32, i32, i32
  }
}

</mosaic_0001>

<llo_original>
// kernel: tpu_custom_call.1
$region0: #{tpu_custom_call.1}
  #allocation0 [shape = 'u32[]', space=smem, size = 0x4, offset = 0x4, fixed_abs, tag = 'smem constant byte address 0x4 - core index']
  #allocation1 [shape = 'u32[144,128]{1,0:T(1,128)}', space=vmem, size = 0x12000, scoped, tag = 'internal scratch']
  %s0 = inlined_call_operand.hbm [shape: f32[2,32], index: 0, kind: input, shape index: {}]
  %s1 = inlined_call_operand.hbm [shape: f32[2,128], index: 1, kind: input, shape index: {}]
  %s2 = inlined_call_operand.hbm [shape: f32[2,32,128], index: 2, kind: output, shape index: {}]
  %s3 = sld [smem:[#allocation0]]
  $region26: #{tpu_custom_call.1} parent=0
    _
  %s5 = ssub.s32 1, %s3
  %s6 = scalar_select 0, %s5, %s3
  $region1: #{tpu_custom_call.1} parent=0
    #allocation2 [shape = 'u8[1024]{0}', space=vmem, size = 0x400, scoped, tag = 'input window, operand 0, single buffered']
    #allocation3 [shape = 's32[1]{0}', space=sflag, size = 0x4, scoped, tag = 'scoped memory for tpu_custom_call.1']
    #allocation4 [shape = 's32[1]{0}', space=sflag, size = 0x4, scoped, tag = 'scoped memory for tpu_custom_call.1']
    #allocation5 [shape = 'u8[1024]{0}', space=vmem, size = 0x400, scoped, tag = 'input window, operand 1, single buffered']
    #allocation6 [shape = 's32[1]{0}', space=sflag, size = 0x4, scoped, tag = 'scoped memory for tpu_custom_call.1']
    #allocation7 [shape = 'u8[32768]{0}', space=vmem, size = 0x8000, scoped, tag = 'output window, operand 0, single buffered']
    %7 = vsyncpa [#allocation3], 0
    %8 = vsyncpa [#allocation6], 0
    %9 = vsyncpa [#allocation4], 0
    // Predicated region
    $region2: #{tpu_custom_call.1} parent=1 // pred_check
      _
    $region3: #{tpu_custom_call.1} parent=1 // pred_check_branch
      %11 = sbr.rel (0) target = $region5
    $region4: #{tpu_custom_call.1} parent=1 // pred_region
      %s13 = ssub.s32 32, 32
      %14 = vsyncadd [#allocation3], %s13
      %s16 = sshll.u32 [#allocation2], 4
      %s17 = int_to_ptr.vmem [resolvable:$true] %s16
      %19 = dma.hbm_to_vmem [thread:$0]  %s0, 32, %s17, [#allocation3]
    $region5: #{tpu_custom_call.1} parent=1 // pred_fallthru
      _
    // Predicated region
    $region6: #{tpu_custom_call.1} parent=1 // pred_check
      _
    $region7: #{tpu_custom_call.1} parent=1 // pred_check_branch
      %21 = sbr.rel (0) target = $region9
    $region8: #{tpu_custom_call.1} parent=1 // pred_region
      %s23 = ssub.s32 32, 32
      %24 = vsyncadd [#allocation6], %s23
      %s26 = sshll.u32 [#allocation5], 4
      %s27 = int_to_ptr.vmem [resolvable:$true] %s26
      %29 = dma.hbm_to_vmem [thread:$0]  %s1, 32, %s27, [#allocation6]
    $region9: #{tpu_custom_call.1} parent=1 // pred_fallthru
      _
    // Predicated region
    $region10: #{tpu_custom_call.1} parent=1 // pred_check
      _
    $region11: #{tpu_custom_call.1} parent=1 // pred_check_branch
      %31 = sbr.rel (0) target = $region13
    $region12: #{tpu_custom_call.1} parent=1 // pred_region
      %32 = dma.done [#allocation3], 32
    $region13: #{tpu_custom_call.1} parent=1 // pred_fallthru
      _
    // Predicated region
    $region14: #{tpu_custom_call.1} parent=1 // pred_check
      _
    $region15: #{tpu_custom_call.1} parent=1 // pred_check_branch
      %34 = sbr.rel (0) target = $region17
    $region16: #{tpu_custom_call.1} parent=1 // pred_region
      %35 = dma.done [#allocation6], 32
    $region17: #{tpu_custom_call.1} parent=1 // pred_fallthru
      _
    %v36 = vld [vmem:[#allocation2] sm:$0x3]
    %v37 = vld [vmem:[#allocation5] sm:$0x3]
    %v38 = vlaneseq
    %v39 = vshrl.u32 %v38, 7
    %v40 = vsub.s32 0, %v39
    %v41 = vrot.slane %v36, %v40
    %43 = vbcast.lane.b32.xlu0 %v41, 256
    %v44 = vpop.permute.xlu0 %43
    %s46 = sor.u32 256, 8
    %47 = vbcast.lane.b32.xlu0 %v41, %s46
    %v48 = vpop.permute.xlu0 %47
    %s50 = sor.u32 256, 16
    %51 = vbcast.lane.b32.xlu0 %v41, %s50
    %v52 = vpop.permute.xlu0 %51
    %s54 = sor.u32 256, 24
    %55 = vbcast.lane.b32.xlu0 %v41, %s54
    %v56 = vpop.permute.xlu0 %55
    %v57 = vlaneseq
    %v58 = vshrl.u32 %v57, 7
    %v59 = vsub.s32 1, %v58
    %v60 = vrot.slane %v36, %v59
    %62 = vbcast.lane.b32.xlu0 %v60, 256
    %v63 = vpop.permute.xlu0 %62
    %s65 = sor.u32 256, 8
    %66 = vbcast.lane.b32.xlu0 %v60, %s65
    %v67 = vpop.permute.xlu0 %66
    %s69 = sor.u32 256, 16
    %70 = vbcast.lane.b32.xlu0 %v60, %s69
    %v71 = vpop.permute.xlu0 %70
    %s73 = sor.u32 256, 24
    %74 = vbcast.lane.b32.xlu0 %v60, %s73
    %v75 = vpop.permute.xlu0 %74
    %v78 = vunpack.c.l.s4 1966171168
    %v79 = vunpack.c.0.s8 %v78
    %v80 = vlaneseq
    %v81 = vshrl.u32 %v80, 7
    %v82 = vsub.s32 %v79, %v81
    %v83 = vrot.slane %v37, %v82
    %v84 = vcombine.high %v83, %v83
    %v86 = vunpack.c.l.s4 1966171168
    %v87 = vunpack.c.0.s8 %v86
    %v88 = vlaneseq
    %v89 = vshrl.u32 %v88, 7
    %v90 = vsub.s32 %v87, %v89
    %v91 = vrot.slane %v83, %v90
    %v93 = vunpack.c.l.s4 1966171168
    %v94 = vunpack.c.0.s8 %v93
    %v95 = vlaneseq
    %v96 = vshrl.u32 %v95, 7
    %v97 = vsub.s32 %v94, %v96
    %v98 = vrot.slane %v84, %v97
    %v99 = vlaneseq
    %v100 = vshrl.u32 %v99, 7
    %v101 = vsub.s32 0, %v100
    %v102 = vrot.slane %v91, %v101
    %v103 = vlaneseq
    %v104 = vshrl.u32 %v103, 7
    %v105 = vsub.s32 0, %v104
    %v106 = vrot.slane %v98, %v105
    %v109 = vmul.f32 %v44, %v102
    %v110 = vmul.f32 %v48, %v102
    %v111 = vmul.f32 %v52, %v102
    %v112 = vmul.f32 %v56, %v102
    %v113 = vmul.f32 %v63, %v106
    %v114 = vmul.f32 %v67, %v106
    %v115 = vmul.f32 %v71, %v106
    %v116 = vmul.f32 %v75, %v106
    %117 = vst [vmem:[#allocation7] sm:$0xff] %v109
    %118 = vst [vmem:[#allocation7 + $0x8] sm:$0xff] %v110
    %119 = vst [vmem:[#allocation7 + $0x10] sm:$0xff] %v111
    %120 = vst [vmem:[#allocation7 + $0x18] sm:$0xff] %v112
    %121 = vst [vmem:[#allocation7 + $0x20] sm:$0xff] %v113
    %122 = vst [vmem:[#allocation7 + $0x28] sm:$0xff] %v114
    %123 = vst [vmem:[#allocation7 + $0x30] sm:$0xff] %v115
    %124 = vst [vmem:[#allocation7 + $0x38] sm:$0xff] %v116
    // Predicated region
    $region18: #{tpu_custom_call.1} parent=1 // pred_check
      _
    $region19: #{tpu_custom_call.1} parent=1 // pred_check_branch
      %126 = sbr.rel (0) target = $region21
    $region20: #{tpu_custom_call.1} parent=1 // pred_region
      %s128 = ssub.s32 1024, 1024
      %129 = vsyncadd [#allocation4], %s128
      %s130 = sshll.u32 [#allocation7], 4
      %s131 = int_to_ptr.vmem [resolvable:$true] %s130
      %136 = dma.vmem_to_hbm [thread:$0]  %s131, 1024, %s2, [#allocation4], 128, 128, 8
    $region21: #{tpu_custom_call.1} parent=1 // pred_fallthru
      _
    // Predicated region
    $region22: #{tpu_custom_call.1} parent=1 // pred_check
      _
    $region23: #{tpu_custom_call.1} parent=1 // pred_check_branch
      %138 = sbr.rel (0) target = $region25
    $region24: #{tpu_custom_call.1} parent=1 // pred_region
      %139 = dma.done [#allocation4], 1024
    $region25: #{tpu_custom_call.1} parent=1 // pred_fallthru
      _
    %140 = vsyncpa [#allocation3], 1
    %141 = vsyncpa [#allocation6], 1
    %142 = vsyncpa [#allocation4], 1

</llo_original>
